<compile_context>
chip_gen: v5e
topology: v5e:2x2
jax: 0.10.0
libtpu: 0.0.40
codegen_flags: <defaults>
</compile_context>

<pallas_src>
import functools

import jax
import jax.numpy as jnp
import numpy as np
from jax.experimental import pallas as pl
from jax.experimental.pallas import tpu as pltpu

TILE_DST = 256     # dst node tile (output rows)
TILE_SRC = 512     # src node tile (matmul contraction dim, multiple of 256)
TILE_PROJ = 512    # projection row tile
NODE_PAD = 512     # node-count padding granularity (lcm of the tiles above)
LANE = 128         # lane-dense padding of feature / output widths


def _round_up(x, m):
    return (x + m - 1) // m * m


def _leaky_relu(x, alpha):
    return jnp.where(x >= 0, x, alpha * x)


def _elu(x):
    return jnp.where(x > 0, x, jnp.exp(jnp.minimum(x, 0.0)) - 1.0)


# ----------------------------------------------------------------------------
# Kernel 1: projection  ftp = h @ W_aug   (bf16 MXU, f32 accumulate)
# ----------------------------------------------------------------------------
def _proj_kernel(h_ref, w_ref, o_ref):
    o_ref[...] = jnp.dot(h_ref[...].astype(jnp.bfloat16),
                         w_ref[...].astype(jnp.bfloat16),
                         preferred_element_type=jnp.float32)


def gat_projection(h_pad, w_aug_pad):
    np_, kin = h_pad.shape
    fout = w_aug_pad.shape[1]
    return pl.pallas_call(
        _proj_kernel,
        out_shape=jax.ShapeDtypeStruct((np_, fout), jnp.float32),
        grid=(np_ // TILE_PROJ,),
        in_specs=[pl.BlockSpec((TILE_PROJ, kin), lambda i: (i, 0)),
                  pl.BlockSpec((kin, fout), lambda i: (0, 0))],
        out_specs=pl.BlockSpec((TILE_PROJ, fout), lambda i: (i, 0)),
        compiler_params=pltpu.CompilerParams(
            dimension_semantics=("parallel",),
            vmem_limit_bytes=32 * 1024 * 1024),
    )(h_pad, w_aug_pad)


# ----------------------------------------------------------------------------
# Kernel 2: edge attention + message passing, tiled over (dst_tile, src_tile)
# ----------------------------------------------------------------------------
def _attn_kernel(ftx_ref, a1_ref, a2_ref, adj_ref, o_ref, acc_ref, *,
                 num_heads, out_dim, alpha, sum_heads, apply_act, plant_one):
    j = pl.program_id(1)
    dp1 = out_dim + 1

    @pl.when(j == 0)
    def _():
        acc_ref[...] = jnp.zeros_like(acc_ref)

    edge = adj_ref[...] != 0                       # (TD, TS) bool mask [dst, src]
    ft_src = ftx_ref[...]                          # (TS, H*(D+1)) bf16

    for hd in range(num_heads):
        a2_col = a2_ref[:, hd:hd + 1]              # (TD, 1)  a2[dst]
        a1_row = a1_ref[hd:hd + 1, :]              # (1, TS)  a1[src]
        # e[dst, src] = a1[src] + a2[dst]  (already oriented: no transpose)
        e = a2_col + a1_row
        att = jnp.minimum(jnp.exp(_leaky_relu(e, alpha)), 10.0)
        att = jnp.where(edge, att, 0.0)
        # rhs = [ft_h | 1]: one MXU matmul yields both sum(att*ft) and z=sum(att)
        rhs = ft_src[:, hd * dp1:(hd + 1) * dp1]   # (TS, D+1) bf16
        acc_ref[hd] = acc_ref[hd] + jnp.dot(
            att.astype(jnp.bfloat16), rhs, preferred_element_type=jnp.float32)

    @pl.when(j == pl.num_programs(1) - 1)
    def _():
        heads = []
        for hd in range(num_heads):
            blk = acc_ref[hd]                      # (TD, D+1) = [sum(att*ft) | z]
            z = blk[:, out_dim:out_dim + 1]
            z = jnp.where(z > 0.0, z, 1.0)         # guard isolated / padded nodes
            heads.append(blk[:, :out_dim] / z)
        if sum_heads:
            ret = heads[0]
            for t in heads[1:]:
                ret = ret + t
        elif num_heads > 1:
            ret = jnp.concatenate(heads, axis=-1)
        else:
            ret = heads[0]
        if apply_act:
            ret = _elu(ret)
        cols = [ret]
        rem = o_ref.shape[-1] - ret.shape[-1]
        if plant_one and rem > 0:                  # constant-1 lane for next layer
            cols.append(jnp.ones((ret.shape[0], 1), jnp.float32))
            rem -= 1
        if rem > 0:
            cols.append(jnp.zeros((ret.shape[0], rem), jnp.float32))
        ret = cols[0] if len(cols) == 1 else jnp.concatenate(cols, axis=-1)
        o_ref[...] = ret.astype(o_ref.dtype)       # lane-dense (TD, 128k) store


def gat_layer_pallas(h_pad, w_aug_pad, adj_t, *, num_heads, out_dim, alpha,
                     sum_heads, apply_act, plant_one):
    np_ = h_pad.shape[0]
    assert np_ % TILE_DST == 0 and np_ % TILE_SRC == 0 and np_ % TILE_PROJ == 0
    dp1 = out_dim + 1

    ftp = gat_projection(h_pad, w_aug_pad)         # (Np, fout_pad) f32

    # Aggregation RHS (per-head [ft_h|1] blocks) cast to bf16 once per layer.
    ftx_b = ftp[:, :num_heads * dp1].astype(jnp.bfloat16)
    a1 = ftp[:, num_heads * dp1:num_heads * dp1 + num_heads]           # a1[src]
    a2 = ftp[:, num_heads * dp1 + num_heads:
                num_heads * dp1 + 2 * num_heads]                       # a2[dst]
    hp = max(8, _round_up(num_heads, 8))
    a1_t = jnp.zeros((hp, np_), jnp.float32).at[:num_heads].set(a1.T)

    out_feat = out_dim if sum_heads else num_heads * out_dim
    out_w = _round_up(out_feat + (1 if plant_one else 0), LANE)
    n_dst = np_ // TILE_DST
    n_src = np_ // TILE_SRC

    kernel = functools.partial(
        _attn_kernel, num_heads=num_heads, out_dim=out_dim, alpha=alpha,
        sum_heads=sum_heads, apply_act=apply_act, plant_one=plant_one)

    return pl.pallas_call(
        kernel,
        out_shape=jax.ShapeDtypeStruct((np_, out_w), jnp.float32),
        grid=(n_dst, n_src),                       # (dst tiles, src tiles)
        in_specs=[
            pl.BlockSpec((TILE_SRC, num_heads * dp1), lambda i, j: (j, 0)),  # ft[src]
            pl.BlockSpec((hp, TILE_SRC), lambda i, j: (0, j)),               # a1[src]
            pl.BlockSpec((TILE_DST, num_heads), lambda i, j: (i, 0)),        # a2[dst]
            pl.BlockSpec((TILE_DST, TILE_SRC), lambda i, j: (i, j)),         # adj[dst,src]
        ],
        out_specs=pl.BlockSpec((TILE_DST, out_w), lambda i, j: (i, 0)),
        scratch_shapes=[pltpu.VMEM((num_heads, TILE_DST, dp1), jnp.float32)],
        compiler_params=pltpu.CompilerParams(
            dimension_semantics=("parallel", "arbitrary"),
            vmem_limit_bytes=32 * 1024 * 1024),
    )(ftx_b, a1_t, a2, adj_t)


# ----------------------------------------------------------------------------
# Pure-JAX reference (mirrors the kernel's bf16-MXU numerical policy)
# ----------------------------------------------------------------------------
def gat_layer_ref(h_pad, w_aug_pad, adj_t, *, num_heads, out_dim, alpha,
                  sum_heads, apply_act, plant_one):
    np_ = h_pad.shape[0]
    dp1 = out_dim + 1
    ftp = jnp.dot(h_pad.astype(jnp.bfloat16), w_aug_pad.astype(jnp.bfloat16),
                  preferred_element_type=jnp.float32)
    a1 = ftp[:, num_heads * dp1:num_heads * dp1 + num_heads]
    a2 = ftp[:, num_heads * dp1 + num_heads:num_heads * dp1 + 2 * num_heads]
    edge = adj_t != 0                              # [dst, src]
    outs = []
    for hd in range(num_heads):
        e = a2[:, hd:hd + 1] + a1[:, hd][None, :]
        att = jnp.minimum(jnp.exp(jnp.where(e >= 0, e, alpha * e)), 10.0)
        att = jnp.where(edge, att, 0.0).astype(jnp.bfloat16)
        rhs = ftp[:, hd * dp1:(hd + 1) * dp1].astype(jnp.bfloat16)     # [ft_h|1]
        agg = jnp.dot(att, rhs, preferred_element_type=jnp.float32)
        z = agg[:, out_dim:out_dim + 1]
        z = jnp.where(z > 0.0, z, 1.0)
        outs.append(agg[:, :out_dim] / z)
    out = functools.reduce(lambda a, b: a + b, outs) if sum_heads \
        else jnp.concatenate(outs, axis=-1)
    if apply_act:
        out = jnp.where(out > 0, out, jnp.exp(jnp.minimum(out, 0.0)) - 1.0)
    out_w = _round_up(out.shape[1] + (1 if plant_one else 0), LANE)
    pad = jnp.zeros((np_, out_w - out.shape[1]), jnp.float32)
    if plant_one:
        pad = pad.at[:, 0].set(1.0)
    return jnp.concatenate([out, pad], axis=-1)


# ----------------------------------------------------------------------------
# Parameters (xavier_normal, gain=1.414), augmented weights, forward driver
# ----------------------------------------------------------------------------
def xavier_normal(key, fan_in, fan_out, shape, gain=1.414):
    std = gain * np.sqrt(2.0 / (fan_in + fan_out))
    return jax.random.normal(key, shape, dtype=jnp.float32) * std


def init_gat_params(key, num_layers, in_dim, num_hidden, num_classes, num_heads):
    configs = [(in_dim, num_hidden, num_heads)]
    for _ in range(num_layers - 1):
        configs.append((num_hidden * num_heads, num_hidden, num_heads))
    configs.append((num_hidden * num_heads, num_classes, 8))  # output layer, 8 heads

    params = []
    for (fi, fo, heads) in configs:
        key, k1, k2, k3 = jax.random.split(key, 4)
        params.append({
            "w": xavier_normal(k1, fi, heads * fo, (fi, heads * fo)),
            "al": xavier_normal(k2, fo, heads, (heads, fo)),
            "ar": xavier_normal(k3, fo, heads, (heads, fo)),
            "heads": heads,
            "out_dim": fo,
        })
    return params


def make_w_aug(w, al, ar, num_heads, out_dim, *, ones_row, kin_pad, fout_pad):
    """W_aug columns: [head0: W_0 | sel1] ... [headH-1: W_{H-1} | sel1] | wl | wr.

    sel1 is a unit row at `ones_row` (the constant-1 lane in the padded input), so
    the projection directly emits the per-head [ft_h | 1] blocks; wl / wr fold
    attn_l / attn_r into extra matmul columns (a1 / a2)."""
    kin = w.shape[0]
    dp1 = out_dim + 1
    w3 = w.reshape(kin, num_heads, out_dim)
    wl = jnp.einsum('khd,hd->kh', w3, al)              # a1 = ft . attn_l
    wr = jnp.einsum('khd,hd->kh', w3, ar)              # a2 = ft . attn_r
    assert kin_pad > ones_row and fout_pad >= num_heads * dp1 + 2 * num_heads
    w_aug = jnp.zeros((kin_pad, fout_pad), jnp.float32)
    for h in range(num_heads):
        w_aug = w_aug.at[:kin, h * dp1:h * dp1 + out_dim].set(w3[:, h, :])
        w_aug = w_aug.at[ones_row, h * dp1 + out_dim].set(1.0)
    w_aug = w_aug.at[:kin, num_heads * dp1:num_heads * dp1 + num_heads].set(wl)
    w_aug = w_aug.at[:kin, num_heads * dp1 + num_heads:
                           num_heads * dp1 + 2 * num_heads].set(wr)
    return w_aug


def gat_forward(features, params, adj, *, alpha, layer_fn):
    n, in_dim = features.shape
    np_ = _round_up(n, NODE_PAD)
    # Adjacency pre-transposed to [dst, src], zero padded, stored as int8 mask.
    adj_t = jnp.zeros((np_, np_), jnp.int8).at[:n, :n].set(adj.T.astype(jnp.int8))
    h = jnp.zeros((np_, _round_up(in_dim + 1, LANE)), jnp.float32)
    h = h.at[:n, :in_dim].set(features)
    h = h.at[:, in_dim].set(1.0)                   # constant-1 lane for "|1" columns
    kin_real = in_dim

    for idx, p in enumerate(params):
        last = idx == len(params) - 1
        heads, d = p["heads"], p["out_dim"]
        fout_pad = _round_up(heads * (d + 1) + 2 * heads, LANE)
        w_aug = make_w_aug(p["w"], p["al"], p["ar"], heads, d,
                           ones_row=kin_real, kin_pad=h.shape[1], fout_pad=fout_pad)
        h = layer_fn(h, w_aug, adj_t,
                     num_heads=heads, out_dim=d, alpha=alpha,
                     sum_heads=last, apply_act=not last, plant_one=not last)
        kin_real = d if last else heads * d
    num_classes = params[-1]["out_dim"]
    return h[:n, :num_classes]


if __name__ == "__main__":
    # Small synthetic graph / model, big enough that both grid axes tile
    # (Np = 1024 -> 4 dst tiles x 2 src tiles).
    N, IN_DIM, NUM_HIDDEN, NUM_CLASSES = 600, 16, 8, 4
    NUM_LAYERS, NUM_HEADS, ALPHA = 2, 2, 0.2

    key = jax.random.PRNGKey(0)
    key, kf, kg, kp = jax.random.split(key, 4)

    features = jax.random.normal(kf, (N, IN_DIM), dtype=jnp.float32)

    # Deterministic random directed graph with self loops, as a dense mask.
    rand = jax.random.uniform(kg, (N, N))
    adj = (rand < 0.05).astype(jnp.float32)
    adj = jnp.maximum(adj, jnp.eye(N, dtype=jnp.float32))   # add self loops

    params = init_gat_params(kp, NUM_LAYERS, IN_DIM, NUM_HIDDEN,
                             NUM_CLASSES, NUM_HEADS)

    logits = gat_forward(features, params, adj, alpha=ALPHA,
                         layer_fn=gat_layer_pallas)
    logits = jax.block_until_ready(logits)

    logits_ref = gat_forward(features, params, adj, alpha=ALPHA,
                             layer_fn=gat_layer_ref)
    np.testing.assert_allclose(np.asarray(logits), np.asarray(logits_ref),
                               rtol=2e-2, atol=2e-2)
    assert logits.shape == (N, NUM_CLASSES)
    print("KERNEL_OK")
</pallas_src>

<mosaic_0001>
module attributes {stable_mosaic.version = 11 : i64} {
  func.func @_proj_kernel(%arg0: i32, %arg1: memref<512x128xf32, #tpu.memory_space<vmem>>, %arg2: memref<128x128xf32, #tpu.memory_space<vmem>>, %arg3: memref<512x128xf32, #tpu.memory_space<vmem>>) attributes {dimension_semantics = [#tpu.dimension_semantics<parallel>], iteration_bounds = array<i64: 2>, scalar_prefetch = 0 : i64, scratch_operands = 0 : i64, tpu.core_type = #tpu.core_type<tc>, window_params = [{transform_indices = @transform_0, window_bounds = array<i64: 512, 128>}, {pipeline_mode = #tpu.pipeline_mode<synchronous>, transform_indices = @transform_1, window_bounds = array<i64: 128, 128>}, {transform_indices = @transform_2, window_bounds = array<i64: 512, 128>}]} {
    %c0 = arith.constant 0 : index
    %c0_0 = arith.constant 0 : index
    %0 = vector.load %arg1[%c0, %c0_0] : memref<512x128xf32, #tpu.memory_space<vmem>>, vector<512x128xf32>
    %1 = arith.truncf %0 : vector<512x128xf32> to vector<512x128xbf16>
    %c0_1 = arith.constant 0 : index
    %c0_2 = arith.constant 0 : index
    %2 = vector.load %arg2[%c0_1, %c0_2] : memref<128x128xf32, #tpu.memory_space<vmem>>, vector<128x128xf32>
    %3 = arith.truncf %2 : vector<128x128xf32> to vector<128x128xbf16>
    %cst = arith.constant dense<0.000000e+00> : vector<512x128xf32>
    %4 = tpu.matmul %1, %3, %cst {dimension_numbers = #tpu.dot_dimension_numbers<[1], [0], [0], [1], [0, 0, 1, 1], [], []>} : vector<512x128xbf16>, vector<128x128xbf16>, vector<512x128xf32> -> vector<512x128xf32>
    %c0_3 = arith.constant 0 : index
    %c0_4 = arith.constant 0 : index
    %5 = vector.load %arg3[%c0_3, %c0_4] : memref<512x128xf32, #tpu.memory_space<vmem>>, vector<512x128xf32>
    tpu.vector_store %arg3[%c0_3, %c0_4], %4 {strides = array<i32>} : memref<512x128xf32, #tpu.memory_space<vmem>>, vector<512x128xf32>,
    return
  }
  func.func @transform_0(%arg0: i32) -> (i32, i32) {
    %c0_i32 = arith.constant 0 : i32
    %c0_i32_0 = arith.constant 0 : i32
    return %arg0, %c0_i32 : i32, i32
  }
  func.func @transform_1(%arg0: i32) -> (i32, i32) {
    %c0_i32 = arith.constant 0 : i32
    %c0_i32_0 = arith.constant 0 : i32
    %c0_i32_1 = arith.constant 0 : i32
    return %c0_i32, %c0_i32_0 : i32, i32
  }
  func.func @transform_2(%arg0: i32) -> (i32, i32) {
    %c0_i32 = arith.constant 0 : i32
    %c0_i32_0 = arith.constant 0 : i32
    return %arg0, %c0_i32 : i32, i32
  }
}

</mosaic_0001>

<llo_original>
// kernel: tpu_custom_call.1
$region0: #{tpu_custom_call.1}
  #allocation0 [shape = 'u32[]', space=smem, size = 0x4, offset = 0x4, fixed_abs, tag = 'smem constant byte address 0x4 - core index']
  #allocation1 [shape = 'u32[72,128]{1,0:T(1,128)}', space=vmem, size = 0x9000, scoped, tag = 'internal scratch']
  %s0 = inlined_call_operand.hbm [shape: f32[1024,128], index: 0, kind: input, shape index: {}]
  %s1 = inlined_call_operand.hbm [shape: f32[128,128], index: 1, kind: input, shape index: {}]
  %s2 = inlined_call_operand.hbm [shape: f32[1024,128], index: 2, kind: output, shape index: {}]
  %s3 = sld [smem:[#allocation0]]
  $region49: #{tpu_custom_call.1} parent=0
    _
  %s5 = ssub.s32 1, %s3
  %s6 = scalar_select 0, %s5, %s3
  $region1: #{tpu_custom_call.1} parent=0
    #allocation2 [shape = 'u8[524288]{0}', space=vmem, size = 0x80000, scoped, tag = 'input window, operand 0']
    #allocation3 [shape = 's32[2]{0}', space=sflag, size = 0x8, scoped, tag = 'scoped memory for tpu_custom_call.1']
    #allocation4 [shape = 's32[2]{0}', space=sflag, size = 0x8, scoped, tag = 'scoped memory for tpu_custom_call.1']
    #allocation5 [shape = 'u8[65536]{0}', space=vmem, size = 0x10000, scoped, tag = 'input window, operand 1, single buffered']
    #allocation6 [shape = 's32[1]{0}', space=sflag, size = 0x4, scoped, tag = 'scoped memory for tpu_custom_call.1']
    #allocation7 [shape = 'u8[524288]{0}', space=vmem, size = 0x80000, scoped, tag = 'output window, operand 0']
    %7 = vsyncpa [#allocation3], 0
    %s8 = scalar_lea.sflag [#allocation3], 1
    %9 = vsyncpa %s8, 0
    %10 = vsyncpa [#allocation6], 0
    %11 = vsyncpa [#allocation4], 0
    %s12 = scalar_lea.sflag [#allocation4], 1
    %13 = vsyncpa %s12, 0
    loop: start=0, step=1, limit=4
    $region2: #{tpu_custom_call.1} parent=1 // loop_pre_header
      _
    $region3: #{tpu_custom_call.1} parent=1 // loop_header
      %s15 = sphi 0, %s19
      %p16 = scmp.ge.s32.totalorder %s15, 4
      %s25 = sphi 0, %s27
      %s28 = sphi 0, %s25
      %s29 = sphi 0, %s28
      %s45 = sphi 0, %s29
      %s49 = sphi 0, %s49
      %s51 = sphi 0, %s49
      %s52 = sphi 0, %s51
      %s66 = sphi 0, %s52
      %s72 = sphi 0, %s74
      %s75 = sphi 0, %s72
      %s76 = sphi 0, %s75
      %s92 = sphi 0, %s76
    $region4: #{tpu_custom_call.1} parent=1 // loop_header_branch
      %18 = sbr.rel (%p16) target = $region8
    $region5: #{tpu_custom_call.1} parent=1 // loop_body
      %s20 = ssub.s32 %s15, 1
      %s21 = ssub.s32 %s15, 2
      %s22 = sadd.s32 %s15, 1
      %s23 = ssub.s32 %s15, %s22
      %p24 = scmp.eq.s32.totalorder %s23, 0
      %s26 = sadd.s32 %s25, 1
      %s27 = scalar_select %p24, %s25, %s26
      %p30 = pneg %p24
      %p31 = scmp.eq.s32.totalorder %s15, 1
      %p32 = por %p30, %p31
      %p33 = scmp.ne.s32.totalorder %s25, %s28
      %p34 = scmp.eq.s32.totalorder %s15, 0
      %p35 = por %p33, %p34
      %p36 = scmp.ne.s32.totalorder %s25, %s28
      %p37 = scmp.eq.s32.totalorder %s20, 1
      %p38 = por %p36, %p37
      %p39 = scmp.ne.s32.totalorder %s28, %s29
      %p40 = scmp.eq.s32.totalorder %s20, 0
      %p41 = por %p39, %p40
      %p42 = scmp.ne.s32.totalorder %s28, %s29
      %p43 = scmp.eq.s32.totalorder %s21, 1
      %p44 = por %p42, %p43
      %p46 = scmp.ne.s32.totalorder %s29, %s45
      %p47 = scmp.eq.s32.totalorder %s21, 0
      %p48 = por %p46, %p47
      %s50 = sadd.s32 %s49, 1
      %p53 = scmp.eq.s32.totalorder %s15, 1
      %p54 = scmp.ne.s32.totalorder %s49, %s51
      %p55 = scmp.eq.s32.totalorder %s15, 0
      %p56 = por %p54, %p55
      %p57 = scmp.ne.s32.totalorder %s49, %s51
      %p58 = scmp.eq.s32.totalorder %s20, 1
      %p59 = por %p57, %p58
      %p60 = scmp.ne.s32.totalorder %s51, %s52
      %p61 = scmp.eq.s32.totalorder %s20, 0
      %p62 = por %p60, %p61
      %p63 = scmp.ne.s32.totalorder %s51, %s52
      %p64 = scmp.eq.s32.totalorder %s21, 1
      %p65 = por %p63, %p64
      %p67 = scmp.ne.s32.totalorder %s52, %s66
      %p68 = scmp.eq.s32.totalorder %s21, 0
      %p69 = por %p67, %p68
      %s70 = ssub.s32 %s15, %s22
      %p71 = scmp.eq.s32.totalorder %s70, 0
      %s73 = sadd.s32 %s72, 1
      %s74 = scalar_select %p71, %s72, %s73
      %p77 = pneg %p71
      %p78 = scmp.eq.s32.totalorder %s15, 1
      %p79 = por %p77, %p78
      %p80 = scmp.ne.s32.totalorder %s72, %s75
      %p81 = scmp.eq.s32.totalorder %s15, 0
      %p82 = por %p80, %p81
      %p83 = scmp.ne.s32.totalorder %s72, %s75
      %p84 = scmp.eq.s32.totalorder %s20, 1
      %p85 = por %p83, %p84
      %p86 = scmp.ne.s32.totalorder %s75, %s76
      %p87 = scmp.eq.s32.totalorder %s20, 0
      %p88 = por %p86, %p87
      %p89 = scmp.ne.s32.totalorder %s75, %s76
      %p90 = scmp.eq.s32.totalorder %s21, 1
      %p91 = por %p89, %p90
      %p93 = scmp.ne.s32.totalorder %s76, %s92
      %p94 = scmp.eq.s32.totalorder %s21, 0
      %p95 = por %p93, %p94
      %p96 = scmp.le.s32.totalorder 1, %s15
      %p97 = scmp.lt.s32.totalorder %s15, 3
      %p98 = pnand %p96, %p97
      %p99 = pneg %p98
      // Predicated region
      $region9: #{tpu_custom_call.1} parent=5 // pred_check
        _
      $region10: #{tpu_custom_call.1} parent=5 // pred_check_branch
        %101 = sbr.rel (%p98) target = $region12
      $region11: #{tpu_custom_call.1} parent=5 // pred_region
        %s102 = ssub.s32 %s15, 1
        // Predicated region
        $region13: #{tpu_custom_call.1} parent=11 // pred_check
          %p103 = pneg %p62
        $region14: #{tpu_custom_call.1} parent=11 // pred_check_branch
          %105 = sbr.rel (%p103) target = $region16
        $region15: #{tpu_custom_call.1} parent=11 // pred_region
          %107 = vsyncadd [#allocation6], 0
          %s108 = sshll.u32 %s1, 4
          %s109 = int_to_ptr.hbm [resolvable:$true] %s108
          %s110 = sshll.u32 [#allocation5], 4
          %s111 = int_to_ptr.vmem [resolvable:$true] %s110
          %116 = dma.hbm_to_vmem [thread:$0]  %s109, 2048, %s111, [#allocation6], 128, 128, 8
        $region16: #{tpu_custom_call.1} parent=11 // pred_fallthru
          _
      $region12: #{tpu_custom_call.1} parent=5 // pred_fallthru
        _
      %p117 = scmp.lt.s32.totalorder %s15, 2
      // Predicated region
      $region17: #{tpu_custom_call.1} parent=5 // pred_check
        %p118 = pneg %p117
      $region18: #{tpu_custom_call.1} parent=5 // pred_check_branch
        %120 = sbr.rel (%p118) target = $region20
      $region19: #{tpu_custom_call.1} parent=5 // pred_region
        // Predicated region
        $region21: #{tpu_custom_call.1} parent=19 // pred_check
          %p121 = pneg %p35
        $region22: #{tpu_custom_call.1} parent=19 // pred_check_branch
          %123 = sbr.rel (%p121) target = $region24
        $region23: #{tpu_custom_call.1} parent=19 // pred_region
          %s124 = sand.u32 %s25, 1
          %s125 = scalar_lea.sflag [#allocation3], %s124
          %s126 = sand.u32 %s25, 1
          %s127 = smul.addr %s126, 512
          %s128 = scalar_lea.vmem [#allocation2], %s127
          %s129 = smul.u32 64, %s15
          %131 = vsyncadd %s125, 0
          %s132 = smul.addr %s129, 8
          %s133 = scalar_lea.hbm %s0, %s132
          %s134 = sshll.u32 %s133, 4
          %s135 = int_to_ptr.hbm [resolvable:$true] %s134
          %s136 = sshll.u32 %s128, 4
          %s137 = int_to_ptr.vmem [resolvable:$true] %s136
          %142 = dma.hbm_to_vmem [thread:$0]  %s135, 8192, %s137, %s125, 128, 128, 8
        $region24: #{tpu_custom_call.1} parent=19 // pred_fallthru
          _
      $region20: #{tpu_custom_call.1} parent=5 // pred_fallthru
        _
      %p143 = scmp.le.s32.totalorder 1, %s15
      %p144 = scmp.lt.s32.totalorder %s15, 3
      %p145 = pnand %p143, %p144
      %p146 = pneg %p145
      // Predicated region
      $region25: #{tpu_custom_call.1} parent=5 // pred_check
        _
      $region26: #{tpu_custom_call.1} parent=5 // pred_check_branch
        %148 = sbr.rel (%p145) target = $region28
      $region27: #{tpu_custom_call.1} parent=5 // pred_region
        %s149 = ssub.s32 %s15, 1
        %s150 = sand.u32 %s28, 1
        %s151 = scalar_lea.sflag [#allocation3], %s150
        %s152 = sand.u32 %s28, 1
        %s153 = smul.addr %s152, 512
        %s154 = scalar_lea.vmem [#allocation2], %s153
        // Predicated region
        $region29: #{tpu_custom_call.1} parent=27 // pred_check
          %p155 = pneg %p41
        $region30: #{tpu_custom_call.1} parent=27 // pred_check_branch
          %157 = sbr.rel (%p155) target = $region32
        $region31: #{tpu_custom_call.1} parent=27 // pred_region
          %159 = dma.done %s151, 8192
        $region32: #{tpu_custom_call.1} parent=27 // pred_fallthru
          _
        // Predicated region
        $region33: #{tpu_custom_call.1} parent=27 // pred_check
          %p160 = pneg %p62
        $region34: #{tpu_custom_call.1} parent=27 // pred_check_branch
          %162 = sbr.rel (%p160) target = $region36
        $region35: #{tpu_custom_call.1} parent=27 // pred_region
          %164 = dma.done [#allocation6], 2048
        $region36: #{tpu_custom_call.1} parent=27 // pred_fallthru
          _
        %s165 = sand.u32 %s28, 1
        %s166 = scalar_lea.sflag [#allocation3], %s165
        %s167 = sand.u32 %s28, 1
        %s168 = smul.addr %s167, 512
        %s169 = scalar_lea.vmem [#allocation2], %s168
        %p170 = pneg %p41
        %p171 = pneg %p38
        %p172 = pneg %p62
        %p173 = pneg %p59
        %p174 = pneg %p88
        %p175 = pneg %p85
        %s176 = sand.u32 %s75, 1
        %s177 = scalar_lea.sflag [#allocation4], %s176
        %s178 = sand.u32 %s75, 1
        %s179 = smul.addr %s178, 512
        %s180 = scalar_lea.vmem [#allocation7], %s179
        %s181 = smul.u32 64, %s20
        %s182 = smul.u32 64, %s20
        %v183 = vld [vmem:[%s154] sm:$0xff]
        %v184 = vld [vmem:[%s154 + $0x8] sm:$0xff]
        %v185 = vld [vmem:[%s154 + $0x10] sm:$0xff]
        %v186 = vld [vmem:[%s154 + $0x18] sm:$0xff]
        %v187 = vld [vmem:[%s154 + $0x20] sm:$0xff]
        %v188 = vld [vmem:[%s154 + $0x28] sm:$0xff]
        %v189 = vld [vmem:[%s154 + $0x30] sm:$0xff]
        %v190 = vld [vmem:[%s154 + $0x38] sm:$0xff]
        %v191 = vld [vmem:[%s154 + $0x40] sm:$0xff]
        %v192 = vld [vmem:[%s154 + $0x48] sm:$0xff]
        %v193 = vld [vmem:[%s154 + $0x50] sm:$0xff]
        %v194 = vld [vmem:[%s154 + $0x58] sm:$0xff]
        %v195 = vld [vmem:[%s154 + $0x60] sm:$0xff]
        %v196 = vld [vmem:[%s154 + $0x68] sm:$0xff]
        %v197 = vld [vmem:[%s154 + $0x70] sm:$0xff]
        %v198 = vld [vmem:[%s154 + $0x78] sm:$0xff]
        %v199 = vld [vmem:[%s154 + $0x80] sm:$0xff]
        %v200 = vld [vmem:[%s154 + $0x88] sm:$0xff]
        %v201 = vld [vmem:[%s154 + $0x90] sm:$0xff]
        %v202 = vld [vmem:[%s154 + $0x98] sm:$0xff]
        %v203 = vld [vmem:[%s154 + $0xa0] sm:$0xff]
        %v204 = vld [vmem:[%s154 + $0xa8] sm:$0xff]
        %v205 = vld [vmem:[%s154 + $0xb0] sm:$0xff]
        %v206 = vld [vmem:[%s154 + $0xb8] sm:$0xff]
        %v207 = vld [vmem:[%s154 + $0xc0] sm:$0xff]
        %v208 = vld [vmem:[%s154 + $0xc8] sm:$0xff]
        %v209 = vld [vmem:[%s154 + $0xd0] sm:$0xff]
        %v210 = vld [vmem:[%s154 + $0xd8] sm:$0xff]
        %v211 = vld [vmem:[%s154 + $0xe0] sm:$0xff]
        %v212 = vld [vmem:[%s154 + $0xe8] sm:$0xff]
        %v213 = vld [vmem:[%s154 + $0xf0] sm:$0xff]
        %v214 = vld [vmem:[%s154 + $0xf8] sm:$0xff]
        %v215 = vld [vmem:[%s154 + $0x100] sm:$0xff]
        %v216 = vld [vmem:[%s154 + $0x108] sm:$0xff]
        %v217 = vld [vmem:[%s154 + $0x110] sm:$0xff]
        %v218 = vld [vmem:[%s154 + $0x118] sm:$0xff]
        %v219 = vld [vmem:[%s154 + $0x120] sm:$0xff]
        %v220 = vld [vmem:[%s154 + $0x128] sm:$0xff]
        %v221 = vld [vmem:[%s154 + $0x130] sm:$0xff]
        %v222 = vld [vmem:[%s154 + $0x138] sm:$0xff]
        %v223 = vld [vmem:[%s154 + $0x140] sm:$0xff]
        %v224 = vld [vmem:[%s154 + $0x148] sm:$0xff]
        %v225 = vld [vmem:[%s154 + $0x150] sm:$0xff]
        %v226 = vld [vmem:[%s154 + $0x158] sm:$0xff]
        %v227 = vld [vmem:[%s154 + $0x160] sm:$0xff]
        %v228 = vld [vmem:[%s154 + $0x168] sm:$0xff]
        %v229 = vld [vmem:[%s154 + $0x170] sm:$0xff]
        %v230 = vld [vmem:[%s154 + $0x178] sm:$0xff]
        %v231 = vld [vmem:[%s154 + $0x180] sm:$0xff]
        %v232 = vld [vmem:[%s154 + $0x188] sm:$0xff]
        %v233 = vld [vmem:[%s154 + $0x190] sm:$0xff]
        %v234 = vld [vmem:[%s154 + $0x198] sm:$0xff]
        %v235 = vld [vmem:[%s154 + $0x1a0] sm:$0xff]
        %v236 = vld [vmem:[%s154 + $0x1a8] sm:$0xff]
        %v237 = vld [vmem:[%s154 + $0x1b0] sm:$0xff]
        %v238 = vld [vmem:[%s154 + $0x1b8] sm:$0xff]
        %v239 = vld [vmem:[%s154 + $0x1c0] sm:$0xff]
        %v240 = vld [vmem:[%s154 + $0x1c8] sm:$0xff]
        %v241 = vld [vmem:[%s154 + $0x1d0] sm:$0xff]
        %v242 = vld [vmem:[%s154 + $0x1d8] sm:$0xff]
        %v243 = vld [vmem:[%s154 + $0x1e0] sm:$0xff]
        %v244 = vld [vmem:[%s154 + $0x1e8] sm:$0xff]
        %v245 = vld [vmem:[%s154 + $0x1f0] sm:$0xff]
        %v246 = vld [vmem:[%s154 + $0x1f8] sm:$0xff]
        %v247 = vpack.c.bf16 %v184, %v183
        %v248 = vpack.c.bf16 %v186, %v185
        %v249 = vpack.c.bf16 %v188, %v187
        %v250 = vpack.c.bf16 %v190, %v189
        %v251 = vpack.c.bf16 %v192, %v191
        %v252 = vpack.c.bf16 %v194, %v193
        %v253 = vpack.c.bf16 %v196, %v195
        %v254 = vpack.c.bf16 %v198, %v197
        %v255 = vpack.c.bf16 %v200, %v199
        %v256 = vpack.c.bf16 %v202, %v201
        %v257 = vpack.c.bf16 %v204, %v203
        %v258 = vpack.c.bf16 %v206, %v205
        %v259 = vpack.c.bf16 %v208, %v207
        %v260 = vpack.c.bf16 %v210, %v209
        %v261 = vpack.c.bf16 %v212, %v211
        %v262 = vpack.c.bf16 %v214, %v213
        %v263 = vpack.c.bf16 %v216, %v215
        %v264 = vpack.c.bf16 %v218, %v217
        %v265 = vpack.c.bf16 %v220, %v219
        %v266 = vpack.c.bf16 %v222, %v221
        %v267 = vpack.c.bf16 %v224, %v223
        %v268 = vpack.c.bf16 %v226, %v225
        %v269 = vpack.c.bf16 %v228, %v227
        %v270 = vpack.c.bf16 %v230, %v229
        %v271 = vpack.c.bf16 %v232, %v231
        %v272 = vpack.c.bf16 %v234, %v233
        %v273 = vpack.c.bf16 %v236, %v235
        %v274 = vpack.c.bf16 %v238, %v237
        %v275 = vpack.c.bf16 %v240, %v239
        %v276 = vpack.c.bf16 %v242, %v241
        %v277 = vpack.c.bf16 %v244, %v243
        %v278 = vpack.c.bf16 %v246, %v245
        %v279 = vld [vmem:[#allocation5] sm:$0xff]
        %v280 = vld [vmem:[#allocation5 + $0x8] sm:$0xff]
        %v281 = vld [vmem:[#allocation5 + $0x10] sm:$0xff]
        %v282 = vld [vmem:[#allocation5 + $0x18] sm:$0xff]
        %v283 = vld [vmem:[#allocation5 + $0x20] sm:$0xff]
        %v284 = vld [vmem:[#allocation5 + $0x28] sm:$0xff]
        %v285 = vld [vmem:[#allocation5 + $0x30] sm:$0xff]
        %v286 = vld [vmem:[#allocation5 + $0x38] sm:$0xff]
        %v287 = vld [vmem:[#allocation5 + $0x40] sm:$0xff]
        %v288 = vld [vmem:[#allocation5 + $0x48] sm:$0xff]
        %v289 = vld [vmem:[#allocation5 + $0x50] sm:$0xff]
        %v290 = vld [vmem:[#allocation5 + $0x58] sm:$0xff]
        %v291 = vld [vmem:[#allocation5 + $0x60] sm:$0xff]
        %v292 = vld [vmem:[#allocation5 + $0x68] sm:$0xff]
        %v293 = vld [vmem:[#allocation5 + $0x70] sm:$0xff]
        %v294 = vld [vmem:[#allocation5 + $0x78] sm:$0xff]
        %v295 = vpack.c.bf16 %v280, %v279
        %v296 = vpack.c.bf16 %v282, %v281
        %v297 = vpack.c.bf16 %v284, %v283
        %v298 = vpack.c.bf16 %v286, %v285
        %v299 = vpack.c.bf16 %v288, %v287
        %v300 = vpack.c.bf16 %v290, %v289
        %v301 = vpack.c.bf16 %v292, %v291
        %v302 = vpack.c.bf16 %v294, %v293
        %303 = vmatpush.bf16.msra.mxu0 %v302
        %304 = vmatpush.bf16.msra.mxu0 %v301
        %305 = vmatpush.bf16.msra.mxu0 %v300
        %306 = vmatpush.bf16.msra.mxu0 %v299
        %307 = vmatpush.bf16.msra.mxu0 %v298
        %308 = vmatpush.bf16.msra.mxu0 %v297
        %309 = vmatpush.bf16.msra.mxu0 %v296
        %310 = vmatpush.bf16.msra.mxu0 %v295
        %311 = vmatmul.bf16.gmra.mxu0 %v247
        %v312 = vpop.f32.mrf.mxu0
        %v313 = vadd.f32 0.0, %v312
        %v314 = vpop.f32.mrf.mxu0
        %v315 = vadd.f32 0.0, %v314
        %316 = vmatmul.bf16.gmra.mxu0 %v248
        %v317 = vpop.f32.mrf.mxu0
        %v318 = vadd.f32 0.0, %v317
        %v319 = vpop.f32.mrf.mxu0
        %v320 = vadd.f32 0.0, %v319
        %321 = vmatmul.bf16.gmra.mxu0 %v249
        %v322 = vpop.f32.mrf.mxu0
        %v323 = vadd.f32 0.0, %v322
        %v324 = vpop.f32.mrf.mxu0
        %v325 = vadd.f32 0.0, %v324
        %326 = vmatmul.bf16.gmra.mxu0 %v250
        %v327 = vpop.f32.mrf.mxu0
        %v328 = vadd.f32 0.0, %v327
        %v329 = vpop.f32.mrf.mxu0
        %v330 = vadd.f32 0.0, %v329
        %331 = vmatmul.bf16.gmra.mxu0 %v251
        %v332 = vpop.f32.mrf.mxu0
        %v333 = vadd.f32 0.0, %v332
        %v334 = vpop.f32.mrf.mxu0
        %v335 = vadd.f32 0.0, %v334
        %336 = vmatmul.bf16.gmra.mxu0 %v252
        %v337 = vpop.f32.mrf.mxu0
        %v338 = vadd.f32 0.0, %v337
        %v339 = vpop.f32.mrf.mxu0
        %v340 = vadd.f32 0.0, %v339
        %341 = vmatmul.bf16.gmra.mxu0 %v253
        %v342 = vpop.f32.mrf.mxu0
        %v343 = vadd.f32 0.0, %v342
        %v344 = vpop.f32.mrf.mxu0
        %v345 = vadd.f32 0.0, %v344
        %346 = vmatmul.bf16.gmra.mxu0 %v254
        %v347 = vpop.f32.mrf.mxu0
        %v348 = vadd.f32 0.0, %v347
        %v349 = vpop.f32.mrf.mxu0
        %v350 = vadd.f32 0.0, %v349
        %351 = vmatmul.bf16.gmra.mxu0 %v255
        %v352 = vpop.f32.mrf.mxu0
        %v353 = vadd.f32 0.0, %v352
        %v354 = vpop.f32.mrf.mxu0
        %v355 = vadd.f32 0.0, %v354
        %356 = vmatmul.bf16.gmra.mxu0 %v256
        %v357 = vpop.f32.mrf.mxu0
        %v358 = vadd.f32 0.0, %v357
        %v359 = vpop.f32.mrf.mxu0
        %v360 = vadd.f32 0.0, %v359
        %361 = vmatmul.bf16.gmra.mxu0 %v257
        %v362 = vpop.f32.mrf.mxu0
        %v363 = vadd.f32 0.0, %v362
        %v364 = vpop.f32.mrf.mxu0
        %v365 = vadd.f32 0.0, %v364
        %366 = vmatmul.bf16.gmra.mxu0 %v258
        %v367 = vpop.f32.mrf.mxu0
        %v368 = vadd.f32 0.0, %v367
        %v369 = vpop.f32.mrf.mxu0
        %v370 = vadd.f32 0.0, %v369
        %371 = vmatmul.bf16.gmra.mxu0 %v259
        %v372 = vpop.f32.mrf.mxu0
        %v373 = vadd.f32 0.0, %v372
        %v374 = vpop.f32.mrf.mxu0
        %v375 = vadd.f32 0.0, %v374
        %376 = vmatmul.bf16.gmra.mxu0 %v260
        %v377 = vpop.f32.mrf.mxu0
        %v378 = vadd.f32 0.0, %v377
        %v379 = vpop.f32.mrf.mxu0
        %v380 = vadd.f32 0.0, %v379
        %381 = vmatmul.bf16.gmra.mxu0 %v261
        %v382 = vpop.f32.mrf.mxu0
        %v383 = vadd.f32 0.0, %v382
        %v384 = vpop.f32.mrf.mxu0
        %v385 = vadd.f32 0.0, %v384
        %386 = vmatmul.bf16.gmra.mxu0 %v262
        %v387 = vpop.f32.mrf.mxu0
        %v388 = vadd.f32 0.0, %v387
        %v389 = vpop.f32.mrf.mxu0
        %v390 = vadd.f32 0.0, %v389
        %391 = vmatmul.bf16.gmra.mxu0 %v263
        %v392 = vpop.f32.mrf.mxu0
        %v393 = vadd.f32 0.0, %v392
        %v394 = vpop.f32.mrf.mxu0
        %v395 = vadd.f32 0.0, %v394
        %396 = vmatmul.bf16.gmra.mxu0 %v264
        %v397 = vpop.f32.mrf.mxu0
        %v398 = vadd.f32 0.0, %v397
        %v399 = vpop.f32.mrf.mxu0
        %v400 = vadd.f32 0.0, %v399
        %401 = vmatmul.bf16.gmra.mxu0 %v265
        %v402 = vpop.f32.mrf.mxu0
        %v403 = vadd.f32 0.0, %v402
        %v404 = vpop.f32.mrf.mxu0
        %v405 = vadd.f32 0.0, %v404
        %406 = vmatmul.bf16.gmra.mxu0 %v266
        %v407 = vpop.f32.mrf.mxu0
        %v408 = vadd.f32 0.0, %v407
        %v409 = vpop.f32.mrf.mxu0
        %v410 = vadd.f32 0.0, %v409
        %411 = vmatmul.bf16.gmra.mxu0 %v267
        %v412 = vpop.f32.mrf.mxu0
        %v413 = vadd.f32 0.0, %v412
        %v414 = vpop.f32.mrf.mxu0
        %v415 = vadd.f32 0.0, %v414
        %416 = vmatmul.bf16.gmra.mxu0 %v268
        %v417 = vpop.f32.mrf.mxu0
        %v418 = vadd.f32 0.0, %v417
        %v419 = vpop.f32.mrf.mxu0
        %v420 = vadd.f32 0.0, %v419
        %421 = vmatmul.bf16.gmra.mxu0 %v269
        %v422 = vpop.f32.mrf.mxu0
        %v423 = vadd.f32 0.0, %v422
        %v424 = vpop.f32.mrf.mxu0
        %v425 = vadd.f32 0.0, %v424
        %426 = vmatmul.bf16.gmra.mxu0 %v270
        %v427 = vpop.f32.mrf.mxu0
        %v428 = vadd.f32 0.0, %v427
        %v429 = vpop.f32.mrf.mxu0
        %v430 = vadd.f32 0.0, %v429
        %431 = vmatmul.bf16.gmra.mxu0 %v271
        %v432 = vpop.f32.mrf.mxu0
        %v433 = vadd.f32 0.0, %v432
        %v434 = vpop.f32.mrf.mxu0
        %v435 = vadd.f32 0.0, %v434
        %436 = vmatmul.bf16.gmra.mxu0 %v272
        %v437 = vpop.f32.mrf.mxu0
        %v438 = vadd.f32 0.0, %v437
        %v439 = vpop.f32.mrf.mxu0
        %v440 = vadd.f32 0.0, %v439
        %441 = vmatmul.bf16.gmra.mxu0 %v273
        %v442 = vpop.f32.mrf.mxu0
        %v443 = vadd.f32 0.0, %v442
        %v444 = vpop.f32.mrf.mxu0
        %v445 = vadd.f32 0.0, %v444
        %446 = vmatmul.bf16.gmra.mxu0 %v274
        %v447 = vpop.f32.mrf.mxu0
        %v448 = vadd.f32 0.0, %v447
        %v449 = vpop.f32.mrf.mxu0
        %v450 = vadd.f32 0.0, %v449
        %451 = vmatmul.bf16.gmra.mxu0 %v275
        %v452 = vpop.f32.mrf.mxu0
        %v453 = vadd.f32 0.0, %v452
        %v454 = vpop.f32.mrf.mxu0
        %v455 = vadd.f32 0.0, %v454
        %456 = vmatmul.bf16.gmra.mxu0 %v276
        %v457 = vpop.f32.mrf.mxu0
        %v458 = vadd.f32 0.0, %v457
        %v459 = vpop.f32.mrf.mxu0
        %v460 = vadd.f32 0.0, %v459
        %461 = vmatmul.bf16.gmra.mxu0 %v277
        %v462 = vpop.f32.mrf.mxu0
        %v463 = vadd.f32 0.0, %v462
        %v464 = vpop.f32.mrf.mxu0
        %v465 = vadd.f32 0.0, %v464
        %466 = vmatmul.bf16.gmra.mxu0 %v278
        %v467 = vpop.f32.mrf.mxu0
        %v468 = vadd.f32 0.0, %v467
        %v469 = vpop.f32.mrf.mxu0
        %v470 = vadd.f32 0.0, %v469
        %471 = vdwg.mxu0
        %472 = vst [vmem:[%s180] sm:$0xff] %v313
        %473 = vst [vmem:[%s180 + $0x8] sm:$0xff] %v315
        %474 = vst [vmem:[%s180 + $0x10] sm:$0xff] %v318
        %475 = vst [vmem:[%s180 + $0x18] sm:$0xff] %v320
        %476 = vst [vmem:[%s180 + $0x20] sm:$0xff] %v323
        %477 = vst [vmem:[%s180 + $0x28] sm:$0xff] %v325
        %478 = vst [vmem:[%s180 + $0x30] sm:$0xff] %v328
        %479 = vst [vmem:[%s180 + $0x38] sm:$0xff] %v330
        %480 = vst [vmem:[%s180 + $0x40] sm:$0xff] %v333
        %481 = vst [vmem:[%s180 + $0x48] sm:$0xff] %v335
        %482 = vst [vmem:[%s180 + $0x50] sm:$0xff] %v338
        %483 = vst [vmem:[%s180 + $0x58] sm:$0xff] %v340
        %484 = vst [vmem:[%s180 + $0x60] sm:$0xff] %v343
        %485 = vst [vmem:[%s180 + $0x68] sm:$0xff] %v345
        %486 = vst [vmem:[%s180 + $0x70] sm:$0xff] %v348
        %487 = vst [vmem:[%s180 + $0x78] sm:$0xff] %v350
        %488 = vst [vmem:[%s180 + $0x80] sm:$0xff] %v353
        %489 = vst [vmem:[%s180 + $0x88] sm:$0xff] %v355
        %490 = vst [vmem:[%s180 + $0x90] sm:$0xff] %v358
        %491 = vst [vmem:[%s180 + $0x98] sm:$0xff] %v360
        %492 = vst [vmem:[%s180 + $0xa0] sm:$0xff] %v363
        %493 = vst [vmem:[%s180 + $0xa8] sm:$0xff] %v365
        %494 = vst [vmem:[%s180 + $0xb0] sm:$0xff] %v368
        %495 = vst [vmem:[%s180 + $0xb8] sm:$0xff] %v370
        %496 = vst [vmem:[%s180 + $0xc0] sm:$0xff] %v373
        %497 = vst [vmem:[%s180 + $0xc8] sm:$0xff] %v375
        %498 = vst [vmem:[%s180 + $0xd0] sm:$0xff] %v378
        %499 = vst [vmem:[%s180 + $0xd8] sm:$0xff] %v380
        %500 = vst [vmem:[%s180 + $0xe0] sm:$0xff] %v383
        %501 = vst [vmem:[%s180 + $0xe8] sm:$0xff] %v385
        %502 = vst [vmem:[%s180 + $0xf0] sm:$0xff] %v388
        %503 = vst [vmem:[%s180 + $0xf8] sm:$0xff] %v390
        %504 = vst [vmem:[%s180 + $0x100] sm:$0xff] %v393
        %505 = vst [vmem:[%s180 + $0x108] sm:$0xff] %v395
        %506 = vst [vmem:[%s180 + $0x110] sm:$0xff] %v398
        %507 = vst [vmem:[%s180 + $0x118] sm:$0xff] %v400
        %508 = vst [vmem:[%s180 + $0x120] sm:$0xff] %v403
        %509 = vst [vmem:[%s180 + $0x128] sm:$0xff] %v405
        %510 = vst [vmem:[%s180 + $0x130] sm:$0xff] %v408
        %511 = vst [vmem:[%s180 + $0x138] sm:$0xff] %v410
        %512 = vst [vmem:[%s180 + $0x140] sm:$0xff] %v413
        %513 = vst [vmem:[%s180 + $0x148] sm:$0xff] %v415
        %514 = vst [vmem:[%s180 + $0x150] sm:$0xff] %v418
        %515 = vst [vmem:[%s180 + $0x158] sm:$0xff] %v420
        %516 = vst [vmem:[%s180 + $0x160] sm:$0xff] %v423
        %517 = vst [vmem:[%s180 + $0x168] sm:$0xff] %v425
        %518 = vst [vmem:[%s180 + $0x170] sm:$0xff] %v428
        %519 = vst [vmem:[%s180 + $0x178] sm:$0xff] %v430
        %520 = vst [vmem:[%s180 + $0x180] sm:$0xff] %v433
        %521 = vst [vmem:[%s180 + $0x188] sm:$0xff] %v435
        %522 = vst [vmem:[%s180 + $0x190] sm:$0xff] %v438
        %523 = vst [vmem:[%s180 + $0x198] sm:$0xff] %v440
        %524 = vst [vmem:[%s180 + $0x1a0] sm:$0xff] %v443
        %525 = vst [vmem:[%s180 + $0x1a8] sm:$0xff] %v445
        %526 = vst [vmem:[%s180 + $0x1b0] sm:$0xff] %v448
        %527 = vst [vmem:[%s180 + $0x1b8] sm:$0xff] %v450
        %528 = vst [vmem:[%s180 + $0x1c0] sm:$0xff] %v453
        %529 = vst [vmem:[%s180 + $0x1c8] sm:$0xff] %v455
        %530 = vst [vmem:[%s180 + $0x1d0] sm:$0xff] %v458
        %531 = vst [vmem:[%s180 + $0x1d8] sm:$0xff] %v460
        %532 = vst [vmem:[%s180 + $0x1e0] sm:$0xff] %v463
        %533 = vst [vmem:[%s180 + $0x1e8] sm:$0xff] %v465
        %534 = vst [vmem:[%s180 + $0x1f0] sm:$0xff] %v468
        %535 = vst [vmem:[%s180 + $0x1f8] sm:$0xff] %v470
        %s536 = sand.u32 %s75, 1
        %s537 = scalar_lea.sflag [#allocation4], %s536
        %s538 = sand.u32 %s75, 1
        %s539 = smul.addr %s538, 512
        %s540 = scalar_lea.vmem [#allocation7], %s539
        // Predicated region
        $region37: #{tpu_custom_call.1} parent=27 // pred_check
          %p541 = pneg %p85
        $region38: #{tpu_custom_call.1} parent=27 // pred_check_branch
          %543 = sbr.rel (%p541) target = $region40
        $region39: #{tpu_custom_call.1} parent=27 // pred_region
          %s544 = smul.u32 64, %s20
          %546 = vsyncadd %s537, 0
          %s547 = smul.addr %s544, 8
          %s548 = scalar_lea.hbm %s2, %s547
          %s549 = sshll.u32 %s540, 4
          %s550 = int_to_ptr.vmem [resolvable:$true] %s549
          %s551 = sshll.u32 %s548, 4
          %s552 = int_to_ptr.hbm [resolvable:$true] %s551
          %557 = dma.vmem_to_hbm [thread:$0]  %s550, 8192, %s552, %s537, 128, 128, 8
        $region40: #{tpu_custom_call.1} parent=27 // pred_fallthru
          _
      $region28: #{tpu_custom_call.1} parent=5 // pred_fallthru
        _
      %p558 = scmp.le.s32.totalorder 2, %s15
      // Predicated region
      $region41: #{tpu_custom_call.1} parent=5 // pred_check
        %p559 = pneg %p558
      $region42: #{tpu_custom_call.1} parent=5 // pred_check_branch
        %561 = sbr.rel (%p559) target = $region44
      $region43: #{tpu_custom_call.1} parent=5 // pred_region
        %s562 = ssub.s32 %s15, 2
        // Predicated region
        $region45: #{tpu_custom_call.1} parent=43 // pred_check
          %p563 = pneg %p91
        $region46: #{tpu_custom_call.1} parent=43 // pred_check_branch
          %565 = sbr.rel (%p563) target = $region48
        $region47: #{tpu_custom_call.1} parent=43 // pred_region
          %s566 = sand.u32 %s76, 1
          %s567 = scalar_lea.sflag [#allocation4], %s566
          %s568 = sand.u32 %s76, 1
          %s569 = smul.addr %s568, 512
          %s570 = scalar_lea.vmem [#allocation7], %s569
          %572 = dma.done %s567, 8192
        $region48: #{tpu_custom_call.1} parent=43 // pred_fallthru
          _
      $region44: #{tpu_custom_call.1} parent=5 // pred_fallthru
        _
    $region6: #{tpu_custom_call.1} parent=1 // loop_footer
      %s19 = sadd.s32 1, %s15
    $region7: #{tpu_custom_call.1} parent=1 // loop_footer_branch
      %14 = sbr.rel target = $region3
    $region8: #{tpu_custom_call.1} parent=1 // loop_exit
      _
    %573 = vsyncpa [#allocation3], 1
    %s574 = scalar_lea.sflag [#allocation3], 1
    %575 = vsyncpa %s574, 1
    %576 = vsyncpa [#allocation6], 1
    %577 = vsyncpa [#allocation4], 1
    %s578 = scalar_lea.sflag [#allocation4], 1
    %579 = vsyncpa %s578, 1

</llo_original>
